<compile_context>
chip_gen: v7x
topology: tpu7x:2x2x1
jax: 0.10.0
libtpu: 0.0.40
codegen_flags: <defaults>
</compile_context>

<pallas_src>
import functools
import math

import jax
import jax.numpy as jnp
from jax.experimental import pallas as pl
from jax.experimental.pallas import tpu as pltpu

_LANE = 128                       # physical lane width (used only for VMEM budgeting)
_VMEM_LIMIT_BYTES = 32 << 20      # explicit scoped VMEM limit, safe on v5e/v6e/v7x
_BLOCK_BUDGET_BYTES = 24 << 20    # double-buffered in+out (io dtype) + f32 temporaries
_MAX_ROW_TILE = 2048


def _softermax_kernel(x_ref, o_ref, *, subtract_max: bool, approx_recip: bool):
    # One tile of rows; the full softmax axis is resident in VMEM.
    x = x_ref[...].astype(jnp.float32)
    if subtract_max:
        x = x - jnp.max(x, axis=-1, keepdims=True)
    # base-2 exponential (torch.pow(2.0, x)).
    e = jnp.exp2(x)
    denom = jnp.sum(e, axis=-1, keepdims=True)
    inv = pl.reciprocal(denom, approx=approx_recip)
    o_ref[...] = (e * inv).astype(o_ref.dtype)


def _round_up(v: int, m: int) -> int:
    return ((v + m - 1) // m) * m


def softermax(x, dim: int = -1, subtract_max: bool = True,
              approx_reciprocal: bool = True, row_tile: int | None = None):
    """Base-2 softmax along `dim` (moved to the last axis if needed)."""
    ndim = x.ndim
    axis = dim % ndim
    moved = axis != ndim - 1
    if moved:
        x = jnp.moveaxis(x, axis, -1)

    work_shape = x.shape
    n = work_shape[-1]
    rows = math.prod(work_shape[:-1]) if len(work_shape) > 1 else 1
    x2d = x.reshape(rows, n)

    itemsize = jnp.dtype(x.dtype).itemsize
    # sublane packing: 8 rows/vreg for 32-bit, 16 for 16-bit, 32 for 8-bit dtypes
    sublane = {4: 8, 2: 16, 1: 32}.get(itemsize, 8)

    # Physical (lane-padded) width, used only to size the VMEM budget; the
    # logical block keeps the exact N so no explicit padding is required.
    n_lanes = max(_LANE, _round_up(n, _LANE))

    # VMEM-budgeted row tile:
    #   2 (double buffer) x 2 (in + out) x row_tile x n_lanes x itemsize  [io buffers]
    # + ~3 x row_tile x n_lanes x 4                                       [f32 temporaries]
    if row_tile is None:
        bytes_per_row = n_lanes * (4 * itemsize + 3 * 4)
        row_tile = int(_BLOCK_BUDGET_BYTES // max(bytes_per_row, 1))
        row_tile = min(row_tile, _MAX_ROW_TILE)
    row_tile = max(sublane, (row_tile // sublane) * sublane)
    row_tile = min(row_tile, _round_up(rows, sublane))

    grid = (pl.cdiv(rows, row_tile),)

    kernel = functools.partial(
        _softermax_kernel, subtract_max=subtract_max, approx_recip=approx_reciprocal)

    cost = pl.CostEstimate(
        flops=4 * rows * n,
        transcendentals=rows * n + rows,
        bytes_accessed=2 * rows * n * itemsize,
    )

    out2d = pl.pallas_call(
        kernel,
        out_shape=jax.ShapeDtypeStruct((rows, n), x.dtype),
        grid_spec=pltpu.PrefetchScalarGridSpec(
            num_scalar_prefetch=0,
            grid=grid,
            in_specs=[pl.BlockSpec((row_tile, n), lambda i: (i, 0))],
            out_specs=pl.BlockSpec((row_tile, n), lambda i: (i, 0)),
        ),
        compiler_params=pltpu.CompilerParams(
            dimension_semantics=("parallel",),
            vmem_limit_bytes=_VMEM_LIMIT_BYTES,
        ),
        cost_estimate=cost,
    )(x2d)

    out = out2d.reshape(work_shape)
    if moved:
        out = jnp.moveaxis(out, -1, axis)
    return out


def softermax_reference(x, dim: int = -1, subtract_max: bool = True):
    x = x.astype(jnp.float32)
    if subtract_max:
        x = x - jnp.max(x, axis=dim, keepdims=True)
    e = jnp.exp2(x)
    return e / jnp.sum(e, axis=dim, keepdims=True)


if __name__ == "__main__":
    key = jax.random.PRNGKey(0)
    k1, k2, k3, k4 = jax.random.split(key, 4)

    # Attention-score-like input: (batch=2, heads=4, seq=16, seq=16)
    x = jax.random.normal(k1, (2, 4, 16, 16), dtype=jnp.float32) * 3.0

    # config.softermax_use_xmax = True (subtract max before exponentiation)
    out = jax.block_until_ready(softermax(x, dim=-1, subtract_max=True))
    ref = softermax_reference(x, dim=-1, subtract_max=True)
    assert out.shape == x.shape
    # approx reciprocal: ~1e-3 relative error in the normalization
    assert jnp.allclose(out, ref, atol=5e-3, rtol=5e-3), "mismatch vs reference (approx)"

    # Exact-reciprocal path matches tightly.
    out_exact = jax.block_until_ready(
        softermax(x, dim=-1, subtract_max=True, approx_reciprocal=False))
    assert jnp.allclose(out_exact, ref, atol=1e-5, rtol=1e-5), "mismatch vs reference (exact)"

    # config.softermax_use_xmax = False (no max subtraction; may overflow for large x,
    # matching the PyTorch reference behavior).
    out2 = jax.block_until_ready(softermax(x, dim=-1, subtract_max=False))
    ref2 = softermax_reference(x, dim=-1, subtract_max=False)
    assert jnp.allclose(out2, ref2, atol=5e-3, rtol=5e-3), "mismatch vs reference (no xmax)"

    # Ragged shape: non-128-multiple softmax axis + partial row tile (masked stores).
    y = jax.random.normal(k2, (3, 5, 19), dtype=jnp.float32) * 2.0
    outy = jax.block_until_ready(softermax(y))
    refy = softermax_reference(y)
    assert jnp.allclose(outy, refy, atol=5e-3, rtol=5e-3), "mismatch vs reference (ragged)"
    assert jnp.allclose(jnp.sum(outy, axis=-1), 1.0, atol=5e-3), "rows do not sum to 1"

    # Force a multi-step grid with a partial last block (rows=15, tile=8 -> grid=2).
    outy2 = jax.block_until_ready(softermax(y, row_tile=8))
    assert jnp.allclose(outy2, refy, atol=5e-3, rtol=5e-3), "mismatch (partial last block)"

    # bf16 I/O (halves HBM traffic); f32 accumulation inside the kernel.
    z = (jax.random.normal(k3, (2, 4, 16, 16), dtype=jnp.float32) * 3.0).astype(jnp.bfloat16)
    outz = jax.block_until_ready(softermax(z))
    refz = softermax_reference(z.astype(jnp.float32))
    assert outz.dtype == jnp.bfloat16
    assert jnp.allclose(outz.astype(jnp.float32), refz, atol=1e-2, rtol=1e-2), "bf16 mismatch"

    # Non-default dim (module allows any dim): handled via moveaxis in the wrapper.
    w = jax.random.normal(k4, (2, 8, 16), dtype=jnp.float32)
    outw = jax.block_until_ready(softermax(w, dim=1))
    refw = softermax_reference(w, dim=1)
    assert jnp.allclose(outw, refw, atol=5e-3, rtol=5e-3), "mismatch vs reference (dim=1)"

    print("KERNEL_OK")
</pallas_src>

<mosaic_0001>
module attributes {stable_mosaic.version = 11 : i64} {
  func.func @_softermax_kernel(%arg0: i32, %arg1: memref<128x16xf32, #tpu.memory_space<vmem>>, %arg2: memref<128x16xf32, #tpu.memory_space<vmem>>) attributes {dimension_semantics = [#tpu.dimension_semantics<parallel>], iteration_bounds = array<i64: 1>, scalar_prefetch = 0 : i64, scratch_operands = 0 : i64, tpu.core_type = #tpu.core_type<tc>, window_params = [{transform_indices = @transform_0, window_bounds = array<i64: 128, 16>}, {transform_indices = @transform_1, window_bounds = array<i64: 128, 16>}]} {
    %c0 = arith.constant 0 : index
    %c0_0 = arith.constant 0 : index
    %0 = vector.load %arg1[%c0, %c0_0] : memref<128x16xf32, #tpu.memory_space<vmem>>, vector<128x16xf32>
    %cst = arith.constant dense<0xFF800000> : vector<128xf32>
    %1 = vector.multi_reduction <maximumf>, %0, %cst [1] : vector<128x16xf32> to vector<128xf32>
    %2 = vector.shape_cast %1 : vector<128xf32> to vector<128x1xf32>
    %3 = vector.broadcast %2 : vector<128x1xf32> to vector<128x16xf32>
    %4 = arith.subf %0, %3 : vector<128x16xf32>
    %5 = math.exp2 %4 : vector<128x16xf32>
    %cst_1 = arith.constant dense<0.000000e+00> : vector<128xf32>
    %6 = vector.multi_reduction <add>, %5, %cst_1 [1] : vector<128x16xf32> to vector<128xf32>
    %7 = vector.shape_cast %6 : vector<128xf32> to vector<128x1xf32>
    %8 = tpu.reciprocal %7 {approx = true} : vector<128x1xf32> -> vector<128x1xf32>
    %9 = vector.broadcast %8 : vector<128x1xf32> to vector<128x16xf32>
    %10 = arith.mulf %5, %9 : vector<128x16xf32>
    %c0_2 = arith.constant 0 : index
    %c0_3 = arith.constant 0 : index
    %11 = vector.load %arg2[%c0_2, %c0_3] : memref<128x16xf32, #tpu.memory_space<vmem>>, vector<128x16xf32>
    tpu.vector_store %arg2[%c0_2, %c0_3], %10 {strides = array<i32>} : memref<128x16xf32, #tpu.memory_space<vmem>>, vector<128x16xf32>,
    return
  }
  func.func @transform_0(%arg0: i32) -> (i32, i32) {
    %c0_i32 = arith.constant 0 : i32
    %c0_i32_0 = arith.constant 0 : i32
    return %arg0, %c0_i32 : i32, i32
  }
  func.func @transform_1(%arg0: i32) -> (i32, i32) {
    %c0_i32 = arith.constant 0 : i32
    %c0_i32_0 = arith.constant 0 : i32
    return %arg0, %c0_i32 : i32, i32
  }
}

</mosaic_0001>

<llo_original>
// kernel: tpu_custom_call.1
$region0: #{tpu_custom_call.1}
  #allocation0 [shape = 'u32[]', space=smem, size = 0x4, offset = 0x4, fixed_abs, tag = 'smem constant byte address 0x4 - core index']
  #allocation1 [shape = 'u32[144,128]{1,0:T(1,128)}', space=vmem, size = 0x12000, scoped, tag = 'internal scratch']
  %s0 = inlined_call_operand.vmem [shape: f32[128,16], index: 0, kind: input, shape index: {}]
  %s1 = inlined_call_operand.vmem [shape: f32[128,16], index: 1, kind: output, shape index: {}]
  %s2 = sld [smem:[#allocation0]]
  $region14: #{tpu_custom_call.1} parent=0
    _
  %s4 = ssub.s32 1, %s2
  %s5 = scalar_select 0, %s4, %s2
  // Predicated region
  $region2: #{tpu_custom_call.1} parent=0 // pred_check
    _
  $region3: #{tpu_custom_call.1} parent=0 // pred_check_branch
    %7 = sbr.rel (0) target = $region5
  $region4: #{tpu_custom_call.1} parent=0 // pred_region
    _
  $region5: #{tpu_custom_call.1} parent=0 // pred_fallthru
    _
  %v8 = vld [vmem:[%s0] sm:$0xff]
  %v9 = vld [vmem:[%s0 + $0x8] sm:$0xff]
  %v10 = vld [vmem:[%s0 + $0x10] sm:$0xff]
  %v11 = vld [vmem:[%s0 + $0x18] sm:$0xff]
  %v12 = vld [vmem:[%s0 + $0x20] sm:$0xff]
  %v13 = vld [vmem:[%s0 + $0x28] sm:$0xff]
  %v14 = vld [vmem:[%s0 + $0x30] sm:$0xff]
  %v15 = vld [vmem:[%s0 + $0x38] sm:$0xff]
  %v16 = vld [vmem:[%s0 + $0x40] sm:$0xff]
  %v17 = vld [vmem:[%s0 + $0x48] sm:$0xff]
  %v18 = vld [vmem:[%s0 + $0x50] sm:$0xff]
  %v19 = vld [vmem:[%s0 + $0x58] sm:$0xff]
  %v20 = vld [vmem:[%s0 + $0x60] sm:$0xff]
  %v21 = vld [vmem:[%s0 + $0x68] sm:$0xff]
  %v22 = vld [vmem:[%s0 + $0x70] sm:$0xff]
  %v23 = vld [vmem:[%s0 + $0x78] sm:$0xff]
  %vm24 = vcmask 130048
  %v25 = vsel %vm24, %v8, -inf
  %26 = vmax.xlane.f32.xlu0 %v25
  %v27 = vpop.xlane.xlu0 %26
  %v28 = vsel %vm24, %v9, -inf
  %29 = vmax.xlane.f32.xlu0 %v28
  %v30 = vpop.xlane.xlu0 %29
  %v31 = vsel %vm24, %v10, -inf
  %32 = vmax.xlane.f32.xlu0 %v31
  %v33 = vpop.xlane.xlu0 %32
  %v34 = vsel %vm24, %v11, -inf
  %35 = vmax.xlane.f32.xlu0 %v34
  %v36 = vpop.xlane.xlu0 %35
  %v37 = vsel %vm24, %v12, -inf
  %38 = vmax.xlane.f32.xlu0 %v37
  %v39 = vpop.xlane.xlu0 %38
  %v40 = vsel %vm24, %v13, -inf
  %41 = vmax.xlane.f32.xlu0 %v40
  %v42 = vpop.xlane.xlu0 %41
  %v43 = vsel %vm24, %v14, -inf
  %44 = vmax.xlane.f32.xlu0 %v43
  %v45 = vpop.xlane.xlu0 %44
  %v46 = vsel %vm24, %v15, -inf
  %47 = vmax.xlane.f32.xlu0 %v46
  %v48 = vpop.xlane.xlu0 %47
  %v49 = vsel %vm24, %v16, -inf
  %50 = vmax.xlane.f32.xlu0 %v49
  %v51 = vpop.xlane.xlu0 %50
  %v52 = vsel %vm24, %v17, -inf
  %53 = vmax.xlane.f32.xlu0 %v52
  %v54 = vpop.xlane.xlu0 %53
  %v55 = vsel %vm24, %v18, -inf
  %56 = vmax.xlane.f32.xlu0 %v55
  %v57 = vpop.xlane.xlu0 %56
  %v58 = vsel %vm24, %v19, -inf
  %59 = vmax.xlane.f32.xlu0 %v58
  %v60 = vpop.xlane.xlu0 %59
  %v61 = vsel %vm24, %v20, -inf
  %62 = vmax.xlane.f32.xlu0 %v61
  %v63 = vpop.xlane.xlu0 %62
  %v64 = vsel %vm24, %v21, -inf
  %65 = vmax.xlane.f32.xlu0 %v64
  %v66 = vpop.xlane.xlu0 %65
  %v67 = vsel %vm24, %v22, -inf
  %68 = vmax.xlane.f32.xlu0 %v67
  %v69 = vpop.xlane.xlu0 %68
  %v70 = vsel %vm24, %v23, -inf
  %71 = vmax.xlane.f32.xlu0 %v70
  %v72 = vpop.xlane.xlu0 %71
  %v73 = vsub.f32 %v8, %v27
  %v74 = vsub.f32 %v9, %v30
  %v75 = vsub.f32 %v10, %v33
  %v76 = vsub.f32 %v11, %v36
  %v77 = vsub.f32 %v12, %v39
  %v78 = vsub.f32 %v13, %v42
  %v79 = vsub.f32 %v14, %v45
  %v80 = vsub.f32 %v15, %v48
  %v81 = vsub.f32 %v16, %v51
  %v82 = vsub.f32 %v17, %v54
  %v83 = vsub.f32 %v18, %v57
  %v84 = vsub.f32 %v19, %v60
  %v85 = vsub.f32 %v20, %v63
  %v86 = vsub.f32 %v21, %v66
  %v87 = vsub.f32 %v22, %v69
  %v88 = vsub.f32 %v23, %v72
  %v89 = vpow.pop %v73
  %v90 = vpow.pop %v74
  %v91 = vpow.pop %v75
  %v92 = vpow.pop %v76
  %v93 = vpow.pop %v77
  %v94 = vpow.pop %v78
  %v95 = vpow.pop %v79
  %v96 = vpow.pop %v80
  %v97 = vpow.pop %v81
  %v98 = vpow.pop %v82
  %v99 = vpow.pop %v83
  %v100 = vpow.pop %v84
  %v101 = vpow.pop %v85
  %v102 = vpow.pop %v86
  %v103 = vpow.pop %v87
  %v104 = vpow.pop %v88
  %v105 = vsel %vm24, %v89, 0.0
  %106 = vadd.xlane.f32.xlu0 %v105
  %v107 = vpop.xlane.xlu0 %106
  %v108 = vsel %vm24, %v90, 0.0
  %109 = vadd.xlane.f32.xlu0 %v108
  %v110 = vpop.xlane.xlu0 %109
  %v111 = vsel %vm24, %v91, 0.0
  %112 = vadd.xlane.f32.xlu0 %v111
  %v113 = vpop.xlane.xlu0 %112
  %v114 = vsel %vm24, %v92, 0.0
  %115 = vadd.xlane.f32.xlu0 %v114
  %v116 = vpop.xlane.xlu0 %115
  %v117 = vsel %vm24, %v93, 0.0
  %118 = vadd.xlane.f32.xlu0 %v117
  %v119 = vpop.xlane.xlu0 %118
  %v120 = vsel %vm24, %v94, 0.0
  %121 = vadd.xlane.f32.xlu0 %v120
  %v122 = vpop.xlane.xlu0 %121
  %v123 = vsel %vm24, %v95, 0.0
  %124 = vadd.xlane.f32.xlu0 %v123
  %v125 = vpop.xlane.xlu0 %124
  %v126 = vsel %vm24, %v96, 0.0
  %127 = vadd.xlane.f32.xlu0 %v126
  %v128 = vpop.xlane.xlu0 %127
  %v129 = vsel %vm24, %v97, 0.0
  %130 = vadd.xlane.f32.xlu0 %v129
  %v131 = vpop.xlane.xlu0 %130
  %v132 = vsel %vm24, %v98, 0.0
  %133 = vadd.xlane.f32.xlu0 %v132
  %v134 = vpop.xlane.xlu0 %133
  %v135 = vsel %vm24, %v99, 0.0
  %136 = vadd.xlane.f32.xlu0 %v135
  %v137 = vpop.xlane.xlu0 %136
  %v138 = vsel %vm24, %v100, 0.0
  %139 = vadd.xlane.f32.xlu0 %v138
  %v140 = vpop.xlane.xlu0 %139
  %v141 = vsel %vm24, %v101, 0.0
  %142 = vadd.xlane.f32.xlu0 %v141
  %v143 = vpop.xlane.xlu0 %142
  %v144 = vsel %vm24, %v102, 0.0
  %145 = vadd.xlane.f32.xlu0 %v144
  %v146 = vpop.xlane.xlu0 %145
  %v147 = vsel %vm24, %v103, 0.0
  %148 = vadd.xlane.f32.xlu0 %v147
  %v149 = vpop.xlane.xlu0 %148
  %v150 = vsel %vm24, %v104, 0.0
  %151 = vadd.xlane.f32.xlu0 %v150
  %v152 = vpop.xlane.xlu0 %151
  %v153 = vrcp.pop %v107
  %v154 = vrcp.pop %v110
  %v155 = vrcp.pop %v113
  %v156 = vrcp.pop %v116
  %v157 = vrcp.pop %v119
  %v158 = vrcp.pop %v122
  %v159 = vrcp.pop %v125
  %v160 = vrcp.pop %v128
  %v161 = vrcp.pop %v131
  %v162 = vrcp.pop %v134
  %v163 = vrcp.pop %v137
  %v164 = vrcp.pop %v140
  %v165 = vrcp.pop %v143
  %v166 = vrcp.pop %v146
  %v167 = vrcp.pop %v149
  %v168 = vrcp.pop %v152
  %v169 = vmul.f32 %v89, %v153
  %v170 = vmul.f32 %v90, %v154
  %v171 = vmul.f32 %v91, %v155
  %v172 = vmul.f32 %v92, %v156
  %v173 = vmul.f32 %v93, %v157
  %v174 = vmul.f32 %v94, %v158
  %v175 = vmul.f32 %v95, %v159
  %v176 = vmul.f32 %v96, %v160
  %v177 = vmul.f32 %v97, %v161
  %v178 = vmul.f32 %v98, %v162
  %v179 = vmul.f32 %v99, %v163
  %v180 = vmul.f32 %v100, %v164
  %v181 = vmul.f32 %v101, %v165
  %v182 = vmul.f32 %v102, %v166
  %v183 = vmul.f32 %v103, %v167
  %v184 = vmul.f32 %v104, %v168
  %185 = vst.msk [vmem:[%s1] sm:$0xff] %vm24, %v169
  %186 = vst.msk [vmem:[%s1 + $0x8] sm:$0xff] %vm24, %v170
  %187 = vst.msk [vmem:[%s1 + $0x10] sm:$0xff] %vm24, %v171
  %188 = vst.msk [vmem:[%s1 + $0x18] sm:$0xff] %vm24, %v172
  %189 = vst.msk [vmem:[%s1 + $0x20] sm:$0xff] %vm24, %v173
  %190 = vst.msk [vmem:[%s1 + $0x28] sm:$0xff] %vm24, %v174
  %191 = vst.msk [vmem:[%s1 + $0x30] sm:$0xff] %vm24, %v175
  %192 = vst.msk [vmem:[%s1 + $0x38] sm:$0xff] %vm24, %v176
  %193 = vst.msk [vmem:[%s1 + $0x40] sm:$0xff] %vm24, %v177
  %194 = vst.msk [vmem:[%s1 + $0x48] sm:$0xff] %vm24, %v178
  %195 = vst.msk [vmem:[%s1 + $0x50] sm:$0xff] %vm24, %v179
  %196 = vst.msk [vmem:[%s1 + $0x58] sm:$0xff] %vm24, %v180
  %197 = vst.msk [vmem:[%s1 + $0x60] sm:$0xff] %vm24, %v181
  %198 = vst.msk [vmem:[%s1 + $0x68] sm:$0xff] %vm24, %v182
  %199 = vst.msk [vmem:[%s1 + $0x70] sm:$0xff] %vm24, %v183
  %200 = vst.msk [vmem:[%s1 + $0x78] sm:$0xff] %vm24, %v184
  // Predicated region
  $region6: #{tpu_custom_call.1} parent=0 // pred_check
    _
  $region7: #{tpu_custom_call.1} parent=0 // pred_check_branch
    %202 = sbr.rel (0) target = $region9
  $region8: #{tpu_custom_call.1} parent=0 // pred_region
    _
  $region9: #{tpu_custom_call.1} parent=0 // pred_fallthru
    _
  // Predicated region
  $region10: #{tpu_custom_call.1} parent=0 // pred_check
    _
  $region11: #{tpu_custom_call.1} parent=0 // pred_check_branch
    %204 = sbr.rel (0) target = $region13
  $region12: #{tpu_custom_call.1} parent=0 // pred_region
    _
  $region13: #{tpu_custom_call.1} parent=0 // pred_fallthru
    _

</llo_original>
